<compile_context>
chip_gen: v7x
topology: tpu7x:2x2x1
jax: 0.10.0
libtpu: 0.0.40
codegen_flags: <defaults>
</compile_context>

<pallas_src>
import functools

import jax
import jax.numpy as jnp
from jax.experimental import pallas as pl
from jax.experimental.pallas import tpu as pltpu


def _round_up(x, m):
    return ((x + m - 1) // m) * m


def _twohot_gather_kernel(i_ref, j_ref, tab_ref, out_ref, *, j_offset):
    """One grid step produces a (rows, 2*d) output slab.

    i_ref, j_ref : VMEM blocks, (rows, 1) int32
    tab_ref      : VMEM, (P_c + P_r, 2*d) float32 block-diagonal table
                   (top-left = col_embed, bottom-right = row_embed)
    out_ref      : VMEM block, (rows, 2*d) float32
    """
    rows = out_ref.shape[0]
    k = tab_ref.shape[0]

    i_idx = i_ref[...]                       # (rows, 1)
    j_idx = j_ref[...] + j_offset            # (rows, 1), offset into row block

    lane = jax.lax.broadcasted_iota(jnp.int32, (rows, k), 1)
    two_hot = ((lane == i_idx) | (lane == j_idx)).astype(jnp.float32)

    # (rows, k) @ (k, 2*d) -> (rows, 2*d); MXU gather + concat in one pass.
    out_ref[...] = jnp.dot(two_hot, tab_ref[...],
                           preferred_element_type=jnp.float32)


class PositionEmbeddingAbsoluteLearned2DOnlyPallas:
    """JAX/Pallas port. Parameters are created deterministically in __init__."""

    def __init__(self, max_num_positions_r=50, max_num_positions_c=50,
                 num_pos_feats=256, *, key=None):
        self.max_num_positions_r = max_num_positions_r
        self.max_num_positions_c = max_num_positions_c
        self.num_pos_feats = num_pos_feats
        if key is None:
            key = jax.random.PRNGKey(0)
        k_row, k_col = jax.random.split(key)
        # nn.init.uniform_ -> U(0, 1)
        self.row_embed = jax.random.uniform(
            k_row, (max_num_positions_r, num_pos_feats), dtype=jnp.float32)
        self.col_embed = jax.random.uniform(
            k_col, (max_num_positions_c, num_pos_feats), dtype=jnp.float32)

        # Pad each table to a multiple of 128 rows (clean MXU K-dim on all
        # generations) and stack block-diagonally once at init:
        #   [ col_embed   0        ]
        #   [ 0           row_embed]
        d = num_pos_feats
        pad_c = _round_up(max_num_positions_c, 128)
        pad_r = _round_up(max_num_positions_r, 128)
        table = jnp.zeros((pad_c + pad_r, 2 * d), jnp.float32)
        table = table.at[:max_num_positions_c, :d].set(self.col_embed)
        table = table.at[pad_c:pad_c + max_num_positions_r, d:].set(
            self.row_embed)
        self._pad_c = pad_c
        self._table = table

    def __call__(self, i, j):
        assert i.shape == j.shape
        orig_shape = i.shape
        d = self.num_pos_feats

        i_flat = jnp.asarray(i, jnp.int32).reshape(-1, 1)
        j_flat = jnp.asarray(j, jnp.int32).reshape(-1, 1)
        n_rows = i_flat.shape[0]

        # Large row blocks (single step for small N) to amortize per-step
        # overhead; rows_per_block always a multiple of 8.
        rows_per_block = min(512, _round_up(n_rows, 8))
        n_total = _round_up(n_rows, rows_per_block)
        n_pad = n_total - n_rows
        if n_pad:
            i_flat = jnp.pad(i_flat, ((0, n_pad), (0, 0)))
            j_flat = jnp.pad(j_flat, ((0, n_pad), (0, 0)))

        kernel = functools.partial(_twohot_gather_kernel,
                                   j_offset=self._pad_c)

        out_flat = pl.pallas_call(
            kernel,
            out_shape=jax.ShapeDtypeStruct((n_total, 2 * d), jnp.float32),
            grid_spec=pl.GridSpec(
                grid=(n_total // rows_per_block,),
                in_specs=[
                    pl.BlockSpec((rows_per_block, 1), lambda n: (n, 0)),
                    pl.BlockSpec((rows_per_block, 1), lambda n: (n, 0)),
                    # whole block-diagonal table resident in VMEM every step
                    pl.BlockSpec(self._table.shape, lambda n: (0, 0)),
                ],
                out_specs=pl.BlockSpec((rows_per_block, 2 * d),
                                       lambda n: (n, 0)),
            ),
            compiler_params=pltpu.CompilerParams(
                dimension_semantics=("parallel",)),
        )(i_flat, j_flat, self._table)

        out = out_flat[:n_rows]
        return out.reshape(*orig_shape, 2 * d)


def _reference(col_embed, row_embed, i, j):
    x_emb = jnp.take(col_embed, i, axis=0)
    y_emb = jnp.take(row_embed, j, axis=0)
    return jnp.concatenate([x_emb, y_emb], axis=-1)


if __name__ == "__main__":
    key = jax.random.PRNGKey(0)
    k_params, k_i, k_j = jax.random.split(key, 3)

    # Small shapes: batch=2, seq(joints)=8, num_pos_feats=128.
    B, S = 2, 8
    module = PositionEmbeddingAbsoluteLearned2DOnlyPallas(
        max_num_positions_r=50, max_num_positions_c=50, num_pos_feats=128,
        key=k_params)

    i_idx = jax.random.randint(k_i, (B, S), 0, module.max_num_positions_c,
                               dtype=jnp.int32)
    j_idx = jax.random.randint(k_j, (B, S), 0, module.max_num_positions_r,
                               dtype=jnp.int32)

    pos = module(i_idx, j_idx)
    pos = jax.block_until_ready(pos)

    ref = _reference(module.col_embed, module.row_embed, i_idx, j_idx)
    assert pos.shape == (B, S, 2 * module.num_pos_feats), pos.shape
    assert pos.dtype == jnp.float32
    assert bool(jnp.allclose(pos, ref)), "mismatch vs reference gather"

    print("KERNEL_OK")
</pallas_src>

<mosaic_0001>
module attributes {stable_mosaic.version = 11 : i64} {
  func.func @_twohot_gather_kernel(%arg0: i32, %arg1: memref<16x1xi32, #tpu.memory_space<vmem>>, %arg2: memref<16x1xi32, #tpu.memory_space<vmem>>, %arg3: memref<256x256xf32, #tpu.memory_space<vmem>>, %arg4: memref<16x256xf32, #tpu.memory_space<vmem>>) attributes {dimension_semantics = [#tpu.dimension_semantics<parallel>], iteration_bounds = array<i64: 1>, scalar_prefetch = 0 : i64, scratch_operands = 0 : i64, tpu.core_type = #tpu.core_type<tc>, window_params = [{transform_indices = @transform_0, window_bounds = array<i64: 16, 1>}, {transform_indices = @transform_1, window_bounds = array<i64: 16, 1>}, {pipeline_mode = #tpu.pipeline_mode<synchronous>, transform_indices = @transform_2, window_bounds = array<i64: 256, 256>}, {transform_indices = @transform_3, window_bounds = array<i64: 16, 256>}]} {
    %c0 = arith.constant 0 : index
    %c0_0 = arith.constant 0 : index
    %0 = vector.load %arg1[%c0, %c0_0] : memref<16x1xi32, #tpu.memory_space<vmem>>, vector<16x1xi32>
    %c0_1 = arith.constant 0 : index
    %c0_2 = arith.constant 0 : index
    %1 = vector.load %arg2[%c0_1, %c0_2] : memref<16x1xi32, #tpu.memory_space<vmem>>, vector<16x1xi32>
    %c128_i32 = arith.constant 128 : i32
    %2 = vector.broadcast %c128_i32 : i32 to vector<16x1xi32>
    %3 = arith.addi %1, %2 : vector<16x1xi32>
    %4 = tpu.iota {dimensions = array<i32: 1>} : vector<16x256xi32>
    %5 = vector.broadcast %0 : vector<16x1xi32> to vector<16x256xi32>
    %6 = arith.cmpi eq, %4, %5 : vector<16x256xi32>
    %7 = vector.broadcast %3 : vector<16x1xi32> to vector<16x256xi32>
    %8 = arith.cmpi eq, %4, %7 : vector<16x256xi32>
    %9 = arith.ori %6, %8 : vector<16x256xi1>
    %10 = arith.extui %9 : vector<16x256xi1> to vector<16x256xi32>
    %11 = arith.sitofp %10 : vector<16x256xi32> to vector<16x256xf32>
    %c0_3 = arith.constant 0 : index
    %c0_4 = arith.constant 0 : index
    %12 = vector.load %arg3[%c0_3, %c0_4] : memref<256x256xf32, #tpu.memory_space<vmem>>, vector<256x256xf32>
    %cst = arith.constant dense<0.000000e+00> : vector<16x256xf32>
    %13 = tpu.matmul %11, %12, %cst {dimension_numbers = #tpu.dot_dimension_numbers<[1], [0], [0], [1], [0, 0, 1, 1], [], []>} : vector<16x256xf32>, vector<256x256xf32>, vector<16x256xf32> -> vector<16x256xf32>
    %c0_5 = arith.constant 0 : index
    %c0_6 = arith.constant 0 : index
    %14 = vector.load %arg4[%c0_5, %c0_6] : memref<16x256xf32, #tpu.memory_space<vmem>>, vector<16x256xf32>
    tpu.vector_store %arg4[%c0_5, %c0_6], %13 {strides = array<i32>} : memref<16x256xf32, #tpu.memory_space<vmem>>, vector<16x256xf32>,
    return
  }
  func.func @transform_0(%arg0: i32) -> (i32, i32) {
    %c0_i32 = arith.constant 0 : i32
    %c0_i32_0 = arith.constant 0 : i32
    return %arg0, %c0_i32 : i32, i32
  }
  func.func @transform_1(%arg0: i32) -> (i32, i32) {
    %c0_i32 = arith.constant 0 : i32
    %c0_i32_0 = arith.constant 0 : i32
    return %arg0, %c0_i32 : i32, i32
  }
  func.func @transform_2(%arg0: i32) -> (i32, i32) {
    %c0_i32 = arith.constant 0 : i32
    %c0_i32_0 = arith.constant 0 : i32
    %c0_i32_1 = arith.constant 0 : i32
    return %c0_i32, %c0_i32_0 : i32, i32
  }
  func.func @transform_3(%arg0: i32) -> (i32, i32) {
    %c0_i32 = arith.constant 0 : i32
    %c0_i32_0 = arith.constant 0 : i32
    return %arg0, %c0_i32 : i32, i32
  }
}

</mosaic_0001>

<llo_original>
// kernel: tpu_custom_call.1
$region0: #{tpu_custom_call.1}
  #allocation0 [shape = 'u32[]', space=smem, size = 0x4, offset = 0x4, fixed_abs, tag = 'smem constant byte address 0x4 - core index']
  #allocation1 [shape = 'u32[144,128]{1,0:T(1,128)}', space=vmem, size = 0x12000, scoped, tag = 'internal scratch']
  %s0 = inlined_call_operand.vmem [shape: s32[16,1], index: 0, kind: input, shape index: {}]
  %s1 = inlined_call_operand.vmem [shape: s32[16,1], index: 1, kind: input, shape index: {}]
  %s2 = inlined_call_operand.hbm [shape: f32[256,256], index: 2, kind: input, shape index: {}]
  %s3 = inlined_call_operand.hbm [shape: f32[16,256], index: 3, kind: output, shape index: {}]
  %s4 = sld [smem:[#allocation0]]
  $region26: #{tpu_custom_call.1} parent=0
    _
  %s6 = ssub.s32 1, %s4
  %s7 = scalar_select 0, %s6, %s4
  $region1: #{tpu_custom_call.1} parent=0
    #allocation2 [shape = 'u8[262144]{0}', space=vmem, size = 0x40000, scoped, tag = 'input window, operand 2, single buffered']
    #allocation3 [shape = 's32[1]{0}', space=sflag, size = 0x4, scoped, tag = 'scoped memory for tpu_custom_call.1']
    #allocation4 [shape = 's32[1]{0}', space=sflag, size = 0x4, scoped, tag = 'scoped memory for tpu_custom_call.1']
    #allocation5 [shape = 'u8[16384]{0}', space=vmem, size = 0x4000, scoped, tag = 'output window, operand 0, single buffered']
    %8 = vsyncpa [#allocation3], 0
    %9 = vsyncpa [#allocation4], 0
    // Predicated region
    $region2: #{tpu_custom_call.1} parent=1 // pred_check
      _
    $region3: #{tpu_custom_call.1} parent=1 // pred_check_branch
      %11 = sbr.rel (0) target = $region5
    $region4: #{tpu_custom_call.1} parent=1 // pred_region
      _
    $region5: #{tpu_custom_call.1} parent=1 // pred_fallthru
      _
    // Predicated region
    $region6: #{tpu_custom_call.1} parent=1 // pred_check
      _
    $region7: #{tpu_custom_call.1} parent=1 // pred_check_branch
      %13 = sbr.rel (0) target = $region9
    $region8: #{tpu_custom_call.1} parent=1 // pred_region
      _
    $region9: #{tpu_custom_call.1} parent=1 // pred_fallthru
      _
    // Predicated region
    $region10: #{tpu_custom_call.1} parent=1 // pred_check
      _
    $region11: #{tpu_custom_call.1} parent=1 // pred_check_branch
      %15 = sbr.rel (0) target = $region13
    $region12: #{tpu_custom_call.1} parent=1 // pred_region
      %s17 = ssub.s32 8192, 8192
      %18 = vsyncadd [#allocation3], %s17
      %s19 = sshll.u32 [#allocation2], 4
      %s20 = int_to_ptr.vmem [resolvable:$true] %s19
      %25 = dma.hbm_to_vmem [thread:$0]  %s2, 8192, %s20, [#allocation3], 256, 256, 16
    $region13: #{tpu_custom_call.1} parent=1 // pred_fallthru
      _
    // Predicated region
    $region14: #{tpu_custom_call.1} parent=1 // pred_check
      _
    $region15: #{tpu_custom_call.1} parent=1 // pred_check_branch
      %27 = sbr.rel (0) target = $region17
    $region16: #{tpu_custom_call.1} parent=1 // pred_region
      %28 = dma.done [#allocation3], 8192
    $region17: #{tpu_custom_call.1} parent=1 // pred_fallthru
      _
    %v29 = vld [vmem:[%s0] sm:$0xff]
    %v30 = vld [vmem:[%s0 + $0x8] sm:$0xff]
    %v31 = vld [vmem:[%s1] sm:$0xff]
    %v32 = vld [vmem:[%s1 + $0x8] sm:$0xff]
    %v33 = vadd.s32 %v31, 128
    %v34 = vadd.s32 %v32, 128
    %v35 = vlaneseq
    %v36 = vand.u32 %v35, 127
    %v37 = vadd.s32 %v36, 128
    %38 = vset.pattern.permute.xlu0 0
    %39 = vperm.xlu0 %38, %v29
    %v40 = vpop.permute.xlu0 %39
    %41 = vset.pattern.permute.xlu0 0
    %42 = vperm.xlu0 %41, %v30
    %v43 = vpop.permute.xlu0 %42
    %vm44 = vcmp.eq.s32.totalorder %v36, %v40
    %vm45 = vcmp.eq.s32.totalorder %v37, %v40
    %vm46 = vcmp.eq.s32.totalorder %v36, %v43
    %vm47 = vcmp.eq.s32.totalorder %v37, %v43
    %48 = vset.pattern.permute.xlu0 0
    %49 = vperm.xlu0 %48, %v33
    %v50 = vpop.permute.xlu0 %49
    %51 = vset.pattern.permute.xlu0 0
    %52 = vperm.xlu0 %51, %v34
    %v53 = vpop.permute.xlu0 %52
    %vm54 = vcmp.eq.s32.totalorder %v36, %v50
    %vm55 = vcmp.eq.s32.totalorder %v37, %v50
    %vm56 = vcmp.eq.s32.totalorder %v36, %v53
    %vm57 = vcmp.eq.s32.totalorder %v37, %v53
    %vm58 = vmor %vm44, %vm54
    %vm59 = vmor %vm45, %vm55
    %vm60 = vmor %vm46, %vm56
    %vm61 = vmor %vm47, %vm57
    %v62 = vsel %vm58, 1, 0
    %v63 = vsel %vm59, 1, 0
    %v64 = vsel %vm60, 1, 0
    %v65 = vsel %vm61, 1, 0
    %v66 = vcvt.s32.f32 %v62
    %v67 = vcvt.s32.f32 %v63
    %v68 = vcvt.s32.f32 %v64
    %v69 = vcvt.s32.f32 %v65
    %v70 = vld [vmem:[#allocation2] sm:$0xff]
    %v71 = vld [vmem:[#allocation2 + $0x8] sm:$0xff]
    %v72 = vld [vmem:[#allocation2 + $0x10] sm:$0xff]
    %v73 = vld [vmem:[#allocation2 + $0x18] sm:$0xff]
    %v74 = vld [vmem:[#allocation2 + $0x20] sm:$0xff]
    %v75 = vld [vmem:[#allocation2 + $0x28] sm:$0xff]
    %v76 = vld [vmem:[#allocation2 + $0x30] sm:$0xff]
    %v77 = vld [vmem:[#allocation2 + $0x38] sm:$0xff]
    %v78 = vld [vmem:[#allocation2 + $0x40] sm:$0xff]
    %v79 = vld [vmem:[#allocation2 + $0x48] sm:$0xff]
    %v80 = vld [vmem:[#allocation2 + $0x50] sm:$0xff]
    %v81 = vld [vmem:[#allocation2 + $0x58] sm:$0xff]
    %v82 = vld [vmem:[#allocation2 + $0x60] sm:$0xff]
    %v83 = vld [vmem:[#allocation2 + $0x68] sm:$0xff]
    %v84 = vld [vmem:[#allocation2 + $0x70] sm:$0xff]
    %v85 = vld [vmem:[#allocation2 + $0x78] sm:$0xff]
    %v86 = vld [vmem:[#allocation2 + $0x80] sm:$0xff]
    %v87 = vld [vmem:[#allocation2 + $0x88] sm:$0xff]
    %v88 = vld [vmem:[#allocation2 + $0x90] sm:$0xff]
    %v89 = vld [vmem:[#allocation2 + $0x98] sm:$0xff]
    %v90 = vld [vmem:[#allocation2 + $0xa0] sm:$0xff]
    %v91 = vld [vmem:[#allocation2 + $0xa8] sm:$0xff]
    %v92 = vld [vmem:[#allocation2 + $0xb0] sm:$0xff]
    %v93 = vld [vmem:[#allocation2 + $0xb8] sm:$0xff]
    %v94 = vld [vmem:[#allocation2 + $0xc0] sm:$0xff]
    %v95 = vld [vmem:[#allocation2 + $0xc8] sm:$0xff]
    %v96 = vld [vmem:[#allocation2 + $0xd0] sm:$0xff]
    %v97 = vld [vmem:[#allocation2 + $0xd8] sm:$0xff]
    %v98 = vld [vmem:[#allocation2 + $0xe0] sm:$0xff]
    %v99 = vld [vmem:[#allocation2 + $0xe8] sm:$0xff]
    %v100 = vld [vmem:[#allocation2 + $0xf0] sm:$0xff]
    %v101 = vld [vmem:[#allocation2 + $0xf8] sm:$0xff]
    %v102 = vld [vmem:[#allocation2 + $0x100] sm:$0xff]
    %v103 = vld [vmem:[#allocation2 + $0x108] sm:$0xff]
    %v104 = vld [vmem:[#allocation2 + $0x110] sm:$0xff]
    %v105 = vld [vmem:[#allocation2 + $0x118] sm:$0xff]
    %v106 = vld [vmem:[#allocation2 + $0x120] sm:$0xff]
    %v107 = vld [vmem:[#allocation2 + $0x128] sm:$0xff]
    %v108 = vld [vmem:[#allocation2 + $0x130] sm:$0xff]
    %v109 = vld [vmem:[#allocation2 + $0x138] sm:$0xff]
    %v110 = vld [vmem:[#allocation2 + $0x140] sm:$0xff]
    %v111 = vld [vmem:[#allocation2 + $0x148] sm:$0xff]
    %v112 = vld [vmem:[#allocation2 + $0x150] sm:$0xff]
    %v113 = vld [vmem:[#allocation2 + $0x158] sm:$0xff]
    %v114 = vld [vmem:[#allocation2 + $0x160] sm:$0xff]
    %v115 = vld [vmem:[#allocation2 + $0x168] sm:$0xff]
    %v116 = vld [vmem:[#allocation2 + $0x170] sm:$0xff]
    %v117 = vld [vmem:[#allocation2 + $0x178] sm:$0xff]
    %v118 = vld [vmem:[#allocation2 + $0x180] sm:$0xff]
    %v119 = vld [vmem:[#allocation2 + $0x188] sm:$0xff]
    %v120 = vld [vmem:[#allocation2 + $0x190] sm:$0xff]
    %v121 = vld [vmem:[#allocation2 + $0x198] sm:$0xff]
    %v122 = vld [vmem:[#allocation2 + $0x1a0] sm:$0xff]
    %v123 = vld [vmem:[#allocation2 + $0x1a8] sm:$0xff]
    %v124 = vld [vmem:[#allocation2 + $0x1b0] sm:$0xff]
    %v125 = vld [vmem:[#allocation2 + $0x1b8] sm:$0xff]
    %v126 = vld [vmem:[#allocation2 + $0x1c0] sm:$0xff]
    %v127 = vld [vmem:[#allocation2 + $0x1c8] sm:$0xff]
    %v128 = vld [vmem:[#allocation2 + $0x1d0] sm:$0xff]
    %v129 = vld [vmem:[#allocation2 + $0x1d8] sm:$0xff]
    %v130 = vld [vmem:[#allocation2 + $0x1e0] sm:$0xff]
    %v131 = vld [vmem:[#allocation2 + $0x1e8] sm:$0xff]
    %v132 = vld [vmem:[#allocation2 + $0x1f0] sm:$0xff]
    %v133 = vld [vmem:[#allocation2 + $0x1f8] sm:$0xff]
    %134 = vmatprep.subr.mxu0 %v71
    %135 = vmatpush1.msra.mxu0 %v70
    %136 = vmatprep.subr.mxu0 %v73
    %137 = vmatpush1.msra.mxu0 %v72
    %138 = vmatprep.subr.mxu0 %v75
    %139 = vmatpush1.msra.mxu0 %v74
    %140 = vmatprep.subr.mxu0 %v77
    %141 = vmatpush1.msra.mxu0 %v76
    %142 = vmatprep.subr.mxu0 %v79
    %143 = vmatpush1.msra.mxu0 %v78
    %144 = vmatprep.subr.mxu0 %v81
    %145 = vmatpush1.msra.mxu0 %v80
    %146 = vmatprep.subr.mxu0 %v83
    %147 = vmatpush1.msra.mxu0 %v82
    %148 = vmatprep.subr.mxu0 %v85
    %149 = vmatpush1.msra.mxu0 %v84
    %150 = vmatprep.subr.mxu0 %v87
    %151 = vmatpush1.msra.mxu0 %v86
    %152 = vmatprep.subr.mxu0 %v89
    %153 = vmatpush1.msra.mxu0 %v88
    %154 = vmatprep.subr.mxu0 %v91
    %155 = vmatpush1.msra.mxu0 %v90
    %156 = vmatprep.subr.mxu0 %v93
    %157 = vmatpush1.msra.mxu0 %v92
    %158 = vmatprep.subr.mxu0 %v95
    %159 = vmatpush1.msra.mxu0 %v94
    %160 = vmatprep.subr.mxu0 %v97
    %161 = vmatpush1.msra.mxu0 %v96
    %162 = vmatprep.subr.mxu0 %v99
    %163 = vmatpush1.msra.mxu0 %v98
    %164 = vmatprep.subr.mxu0 %v101
    %165 = vmatpush1.msra.mxu0 %v100
    %166 = vmatprep.subr.mxu0 %v103
    %167 = vmatpush1.msra.mxu0 %v102
    %168 = vmatprep.subr.mxu0 %v105
    %169 = vmatpush1.msra.mxu0 %v104
    %170 = vmatprep.subr.mxu0 %v107
    %171 = vmatpush1.msra.mxu0 %v106
    %172 = vmatprep.subr.mxu0 %v109
    %173 = vmatpush1.msra.mxu0 %v108
    %174 = vmatprep.subr.mxu0 %v111
    %175 = vmatpush1.msra.mxu0 %v110
    %176 = vmatprep.subr.mxu0 %v113
    %177 = vmatpush1.msra.mxu0 %v112
    %178 = vmatprep.subr.mxu0 %v115
    %179 = vmatpush1.msra.mxu0 %v114
    %180 = vmatprep.subr.mxu0 %v117
    %181 = vmatpush1.msra.mxu0 %v116
    %182 = vmatprep.subr.mxu0 %v119
    %183 = vmatpush1.msra.mxu0 %v118
    %184 = vmatprep.subr.mxu0 %v121
    %185 = vmatpush1.msra.mxu0 %v120
    %186 = vmatprep.subr.mxu0 %v123
    %187 = vmatpush1.msra.mxu0 %v122
    %188 = vmatprep.subr.mxu0 %v125
    %189 = vmatpush1.msra.mxu0 %v124
    %190 = vmatprep.subr.mxu0 %v127
    %191 = vmatpush1.msra.mxu0 %v126
    %192 = vmatprep.subr.mxu0 %v129
    %193 = vmatpush1.msra.mxu0 %v128
    %194 = vmatprep.subr.mxu0 %v131
    %195 = vmatpush1.msra.mxu0 %v130
    %196 = vmatprep.subr.mxu0 %v133
    %197 = vmatpush1.msra.mxu0 %v132
    %198 = vmatprep.mubr.f32.mxu0 %v67
    %199 = vmatmul.mubr.f32.gmra.mrb[0].mxu0 %v66
    %v200 = vpop.f32.mrb[0].mxu0
    %v201 = vadd.f32 0.0, %v200
    %v202 = vpop.f32.mrb[0].mxu0
    %v203 = vadd.f32 0.0, %v202
    %204 = vmatprep.mubr.f32.mxu0 %v69
    %205 = vmatmul.mubr.f32.gmra.mrb[0].mxu0 %v68
    %v206 = vpop.f32.mrb[0].mxu0
    %v207 = vadd.f32 0.0, %v206
    %v208 = vpop.f32.mrb[0].mxu0
    %v209 = vadd.f32 0.0, %v208
    %210 = vdwg.mxu0
    %211 = vst [vmem:[#allocation5] sm:$0xff] %v201
    %212 = vst [vmem:[#allocation5 + $0x8] sm:$0xff] %v203
    %213 = vst [vmem:[#allocation5 + $0x10] sm:$0xff] %v207
    %214 = vst [vmem:[#allocation5 + $0x18] sm:$0xff] %v209
    // Predicated region
    $region18: #{tpu_custom_call.1} parent=1 // pred_check
      _
    $region19: #{tpu_custom_call.1} parent=1 // pred_check_branch
      %216 = sbr.rel (0) target = $region21
    $region20: #{tpu_custom_call.1} parent=1 // pred_region
      %s218 = ssub.s32 512, 512
      %219 = vsyncadd [#allocation4], %s218
      %s220 = sshll.u32 [#allocation5], 4
      %s221 = int_to_ptr.vmem [resolvable:$true] %s220
      %226 = dma.vmem_to_hbm [thread:$0]  %s221, 512, %s3, [#allocation4], 256, 256, 16
    $region21: #{tpu_custom_call.1} parent=1 // pred_fallthru
      _
    // Predicated region
    $region22: #{tpu_custom_call.1} parent=1 // pred_check
      _
    $region23: #{tpu_custom_call.1} parent=1 // pred_check_branch
      %228 = sbr.rel (0) target = $region25
    $region24: #{tpu_custom_call.1} parent=1 // pred_region
      %229 = dma.done [#allocation4], 512
    $region25: #{tpu_custom_call.1} parent=1 // pred_fallthru
      _
    %230 = vsyncpa [#allocation3], 1
    %231 = vsyncpa [#allocation4], 1

</llo_original>
